<compile_context>
chip_gen: v7x
topology: tpu7x:2x2x1
jax: 0.10.0
libtpu: 0.0.40
codegen_flags: <defaults>
</compile_context>

<pallas_src>
import functools

import jax
import jax.numpy as jnp
from jax.experimental import pallas as pl
from jax.experimental.pallas import tpu as pltpu


def _round_up(a, m):
    return ((a + m - 1) // m) * m


# ---------------------------------------------------------------------------
# Kernel: one row-block of the batch per grid step; weights are resident.
# ---------------------------------------------------------------------------
def _coupling_kernel(x1_ref, x2_ref, logpx_ref,
                     w1_ref, b1_ref, w2_ref, b2_ref,
                     w3s_ref, b3s_ref, w3t_ref, b3t_ref,
                     y_ref, logpx_out_ref, *, reverse, swap):
    x1 = x1_ref[...]                     # [TB, in_dim]  conditioning half
    x2 = x2_ref[...]                     # [TB, out_dim] transformed half

    # net_s_t: Linear -> ReLU -> Linear -> ReLU -> Linear (split into s / t)
    h = jnp.dot(x1, w1_ref[...], preferred_element_type=jnp.float32) + b1_ref[...]
    h = jnp.maximum(h, 0.0)
    h = jnp.dot(h, w2_ref[...], preferred_element_type=jnp.float32) + b2_ref[...]
    h = jnp.maximum(h, 0.0)

    # scale pre-activation (already includes the +2.0) and shift
    z = jnp.dot(h, w3s_ref[...], preferred_element_type=jnp.float32) + b3s_ref[...] + 2.0
    shift = jnp.dot(h, w3t_ref[...], preferred_element_type=jnp.float32) + b3t_ref[...]

    # log(sigmoid(z)) computed stably as -softplus(-z)
    log_scale = -(jnp.maximum(-z, 0.0) + jnp.log(1.0 + jnp.exp(-jnp.abs(z))))
    logdetjac = jnp.sum(log_scale, axis=1, keepdims=True)      # [TB, 1]

    if not reverse:
        scale = jax.nn.sigmoid(z)
        y1 = x2 * scale + shift
        dlp = -logdetjac
    else:
        inv_scale = 1.0 + jnp.exp(-z)    # exact 1/sigmoid(z); no vector divide
        y1 = (x2 - shift) * inv_scale
        dlp = logdetjac

    in_w = x1.shape[1]
    out_w = x2.shape[1]
    if not swap:
        y_ref[:, :in_w] = x1             # pass-through half
        y_ref[:, in_w:] = y1             # transformed half
    else:
        y_ref[:, :out_w] = y1
        y_ref[:, out_w:] = x1

    logpx_out_ref[...] = logpx_ref[...] + dlp


def _pick_row_tile(B, in_dim, out_dim, weight_bytes,
                   vmem_budget=24 * 1024 * 1024):
    """Largest row tile (multiple of 8, <=512) whose double-buffered working
    set plus the resident weights fits in the VMEM budget."""
    D = in_dim + out_dim
    TB = min(512, _round_up(B, 8))
    while TB > 8:
        # inputs (x1, x2, logpx) + outputs (y, logpx) all double-buffered
        per_step = 4 * TB * (in_dim + out_dim + 1 + D + 1)
        if weight_bytes + 2 * per_step <= vmem_budget:
            break
        TB //= 2
    return max(8, TB)


def _call_coupling_kernel(x1, x2, logpx, w1, b1, w2, b2, w3s, b3s, w3t, b3t,
                          *, reverse, swap):
    B = x1.shape[0]
    in_dim = x1.shape[1]
    out_dim = x2.shape[1]
    D = in_dim + out_dim
    H = w1.shape[1]

    weight_elems = (w1.size + b1.size + w2.size + b2.size +
                    w3s.size + b3s.size + w3t.size + b3t.size)
    TB = _pick_row_tile(B, in_dim, out_dim, 4 * weight_elems)
    B_pad = _round_up(B, TB)
    if B_pad != B:
        pad = B_pad - B
        x1 = jnp.pad(x1, ((0, pad), (0, 0)))
        x2 = jnp.pad(x2, ((0, pad), (0, 0)))
        logpx = jnp.pad(logpx, ((0, pad), (0, 0)))

    grid = (B_pad // TB,)

    def row_spec(width):
        return pl.BlockSpec((TB, width), lambda i: (i, 0))

    def const_spec(a):
        # Full array as a single block with a constant index_map: fetched once,
        # resident in VMEM across all grid steps.
        return pl.BlockSpec(a.shape, lambda i: (0, 0))

    flops = 2 * B_pad * (in_dim * H + H * H + H * 2 * out_dim)
    transcendentals = 3 * B_pad * out_dim                 # sigmoid + exp + log
    bytes_accessed = 4 * (B_pad * (in_dim + out_dim + 1)  # inputs
                          + weight_elems                  # params
                          + B_pad * (D + 1))              # outputs

    kernel = functools.partial(_coupling_kernel, reverse=reverse, swap=swap)

    y, new_logpx = pl.pallas_call(
        kernel,
        out_shape=(
            jax.ShapeDtypeStruct((B_pad, D), jnp.float32),
            jax.ShapeDtypeStruct((B_pad, 1), jnp.float32),
        ),
        grid=grid,
        in_specs=[
            row_spec(in_dim), row_spec(out_dim), row_spec(1),
            const_spec(w1), const_spec(b1),
            const_spec(w2), const_spec(b2),
            const_spec(w3s), const_spec(b3s),
            const_spec(w3t), const_spec(b3t),
        ],
        out_specs=(row_spec(D), row_spec(1)),
        compiler_params=pltpu.CompilerParams(
            dimension_semantics=("parallel",),        # shard batch over TCs (v7x)
            vmem_limit_bytes=32 * 1024 * 1024,        # modest tiles; safe v5e..v7x
        ),
        cost_estimate=pl.CostEstimate(
            flops=flops,
            transcendentals=transcendentals,
            bytes_accessed=bytes_accessed,
        ),
    )(x1, x2, logpx, w1, b1, w2, b2, w3s, b3s, w3t, b3t)

    if B_pad != B:
        y = y[:B]
        new_logpx = new_logpx[:B]
    return y, new_logpx


# ---------------------------------------------------------------------------
# Python-side module mirror: parameters + cheap input-side plumbing.
# ---------------------------------------------------------------------------
class CouplingLayerPallas:
    def __init__(self, d, intermediate_dim, swap=False, key=None):
        self.d = d - d // 2          # conditioning half width (ceil(d/2))
        self.total_dim = d
        self.swap = swap
        out_dim = d - self.d

        if key is None:
            key = jax.random.PRNGKey(0)
        ks = jax.random.split(key, 6)

        def linear_init(kw, kb, fan_in, fan_out):
            # matches torch.nn.Linear default: U(-1/sqrt(fan_in), 1/sqrt(fan_in))
            bound = 1.0 / jnp.sqrt(jnp.float32(fan_in))
            w = jax.random.uniform(kw, (fan_in, fan_out), jnp.float32, -bound, bound)
            b = jax.random.uniform(kb, (1, fan_out), jnp.float32, -bound, bound)
            return w, b

        self.w1, self.b1 = linear_init(ks[0], ks[1], self.d, intermediate_dim)
        self.w2, self.b2 = linear_init(ks[2], ks[3], intermediate_dim, intermediate_dim)
        w3, b3 = linear_init(ks[4], ks[5], intermediate_dim, out_dim * 2)
        # pre-split the final layer into scale / shift halves (host-side, once)
        self.w3s, self.w3t = w3[:, :out_dim], w3[:, out_dim:]
        self.b3s, self.b3t = b3[:, :out_dim], b3[:, out_dim:]

    def __call__(self, x, logpx=None, reverse=False):
        d = self.d
        D_tot = self.total_dim
        if self.swap:
            if D_tot % 2 == 0:
                # even dim: the swap is just two plain slices (no host concat)
                x1 = x[:, d:]
                x2 = x[:, :d]
            else:
                # odd dim: faithful to torch (conditioning half straddles the
                # swap boundary), so materialize the swapped view once.
                x_work = jnp.concatenate([x[:, d:], x[:, :d]], axis=1)
                x1 = x_work[:, :d]
                x2 = x_work[:, d:]
        else:
            x1 = x[:, :d]
            x2 = x[:, d:]

        B = x.shape[0]
        lp = jnp.zeros((B, 1), jnp.float32) if logpx is None else logpx

        y, new_logpx = _call_coupling_kernel(
            x1, x2, lp,
            self.w1, self.b1, self.w2, self.b2,
            self.w3s, self.b3s, self.w3t, self.b3t,
            reverse=reverse, swap=self.swap)

        if logpx is None:
            return y
        return y, new_logpx


# ---------------------------------------------------------------------------
# Pure-JAX reference (torch-faithful math) for a sanity check.
# ---------------------------------------------------------------------------
def _reference(layer, x, logpx, reverse=False):
    d = layer.d
    if layer.swap:
        x = jnp.concatenate([x[:, d:], x[:, :d]], axis=1)
    x1 = x[:, :d]
    x2 = x[:, d:]
    out_dim = x2.shape[1]
    h = jnp.maximum(x1 @ layer.w1 + layer.b1, 0.0)
    h = jnp.maximum(h @ layer.w2 + layer.b2, 0.0)
    w3 = jnp.concatenate([layer.w3s, layer.w3t], axis=1)
    b3 = jnp.concatenate([layer.b3s, layer.b3t], axis=1)
    s_t = h @ w3 + b3
    scale = jax.nn.sigmoid(s_t[:, :out_dim] + 2.0)
    shift = s_t[:, out_dim:]
    logdetjac = jnp.sum(jnp.log(scale), axis=1, keepdims=True)
    if not reverse:
        y1 = x2 * scale + shift
        dlp = -logdetjac
    else:
        y1 = (x2 - shift) / scale
        dlp = logdetjac
    y = (jnp.concatenate([x1, y1], axis=1) if not layer.swap
         else jnp.concatenate([y1, x1], axis=1))
    return y, logpx + dlp


if __name__ == "__main__":
    key = jax.random.PRNGKey(0)
    k_x, k_x2, k_x3, k_p, k_p2, k_p3 = jax.random.split(key, 6)

    D, H = 8, 32                                 # feature dim, intermediate_dim

    # --- forward, swap=True (even dim: slice-only swap path), B multiple of 8 ---
    B = 8
    x = jax.random.normal(k_x, (B, D), jnp.float32)
    logpx = jnp.zeros((B, 1), jnp.float32)
    layer = CouplingLayerPallas(D, H, swap=True, key=k_p)

    y, new_logpx = layer(x, logpx=logpx, reverse=False)
    y = jax.block_until_ready(y)
    new_logpx = jax.block_until_ready(new_logpx)

    y_ref, logpx_ref = _reference(layer, x, logpx, reverse=False)
    assert jnp.allclose(y, y_ref, atol=1e-5, rtol=1e-5)
    assert jnp.allclose(new_logpx, logpx_ref, atol=1e-5, rtol=1e-5)

    # --- reverse, swap=False, batch not a multiple of the tile (pads) ---
    B2 = 10
    x2 = jax.random.normal(k_x2, (B2, D), jnp.float32)
    logpx2 = jnp.zeros((B2, 1), jnp.float32)
    layer2 = CouplingLayerPallas(D, H, swap=False, key=k_p2)

    y2, new_logpx2 = layer2(x2, logpx=logpx2, reverse=True)
    y2 = jax.block_until_ready(y2)
    new_logpx2 = jax.block_until_ready(new_logpx2)

    y2_ref, logpx2_ref = _reference(layer2, x2, logpx2, reverse=True)
    assert jnp.allclose(y2, y2_ref, atol=1e-5, rtol=1e-5)
    assert jnp.allclose(new_logpx2, logpx2_ref, atol=1e-5, rtol=1e-5)

    # --- forward, odd feature dim with swap=True (exercises the concat path) ---
    D3, B3 = 7, 4
    x3 = jax.random.normal(k_x3, (B3, D3), jnp.float32)
    logpx3 = jnp.zeros((B3, 1), jnp.float32)
    layer3 = CouplingLayerPallas(D3, H, swap=True, key=k_p3)

    y3, new_logpx3 = layer3(x3, logpx=logpx3, reverse=False)
    y3 = jax.block_until_ready(y3)
    new_logpx3 = jax.block_until_ready(new_logpx3)

    y3_ref, logpx3_ref = _reference(layer3, x3, logpx3, reverse=False)
    assert jnp.allclose(y3, y3_ref, atol=1e-5, rtol=1e-5)
    assert jnp.allclose(new_logpx3, logpx3_ref, atol=1e-5, rtol=1e-5)

    print("KERNEL_OK")
</pallas_src>

<mosaic_0001>
module attributes {stable_mosaic.version = 11 : i64} {
  func.func @_coupling_kernel(%arg0: i32, %arg1: memref<8x4xf32, #tpu.memory_space<vmem>>, %arg2: memref<8x4xf32, #tpu.memory_space<vmem>>, %arg3: memref<8x1xf32, #tpu.memory_space<vmem>>, %arg4: memref<4x32xf32, #tpu.memory_space<vmem>>, %arg5: memref<1x32xf32, #tpu.memory_space<vmem>>, %arg6: memref<32x32xf32, #tpu.memory_space<vmem>>, %arg7: memref<1x32xf32, #tpu.memory_space<vmem>>, %arg8: memref<32x4xf32, #tpu.memory_space<vmem>>, %arg9: memref<1x4xf32, #tpu.memory_space<vmem>>, %arg10: memref<32x4xf32, #tpu.memory_space<vmem>>, %arg11: memref<1x4xf32, #tpu.memory_space<vmem>>, %arg12: memref<8x8xf32, #tpu.memory_space<vmem>>, %arg13: memref<8x1xf32, #tpu.memory_space<vmem>>) attributes {dimension_semantics = [#tpu.dimension_semantics<parallel>], iteration_bounds = array<i64: 1>, scalar_prefetch = 0 : i64, scratch_operands = 0 : i64, tpu.core_type = #tpu.core_type<tc>, window_params = [{transform_indices = @transform_0, window_bounds = array<i64: 8, 4>}, {transform_indices = @transform_1, window_bounds = array<i64: 8, 4>}, {transform_indices = @transform_2, window_bounds = array<i64: 8, 1>}, {pipeline_mode = #tpu.pipeline_mode<synchronous>, transform_indices = @transform_3, window_bounds = array<i64: 4, 32>}, {pipeline_mode = #tpu.pipeline_mode<synchronous>, transform_indices = @transform_4, window_bounds = array<i64: 1, 32>}, {pipeline_mode = #tpu.pipeline_mode<synchronous>, transform_indices = @transform_5, window_bounds = array<i64: 32, 32>}, {pipeline_mode = #tpu.pipeline_mode<synchronous>, transform_indices = @transform_6, window_bounds = array<i64: 1, 32>}, {pipeline_mode = #tpu.pipeline_mode<synchronous>, transform_indices = @transform_7, window_bounds = array<i64: 32, 4>}, {pipeline_mode = #tpu.pipeline_mode<synchronous>, transform_indices = @transform_8, window_bounds = array<i64: 1, 4>}, {pipeline_mode = #tpu.pipeline_mode<synchronous>, transform_indices = @transform_9, window_bounds = array<i64: 32, 4>}, {pipeline_mode = #tpu.pipeline_mode<synchronous>, transform_indices = @transform_10, window_bounds = array<i64: 1, 4>}, {transform_indices = @transform_11, window_bounds = array<i64: 8, 8>}, {transform_indices = @transform_12, window_bounds = array<i64: 8, 1>}]} {
    %c0 = arith.constant 0 : index
    %c0_0 = arith.constant 0 : index
    %0 = vector.load %arg1[%c0, %c0_0] : memref<8x4xf32, #tpu.memory_space<vmem>>, vector<8x4xf32>
    %c0_1 = arith.constant 0 : index
    %c0_2 = arith.constant 0 : index
    %1 = vector.load %arg2[%c0_1, %c0_2] : memref<8x4xf32, #tpu.memory_space<vmem>>, vector<8x4xf32>
    %c0_3 = arith.constant 0 : index
    %c0_4 = arith.constant 0 : index
    %2 = vector.load %arg4[%c0_3, %c0_4] : memref<4x32xf32, #tpu.memory_space<vmem>>, vector<4x32xf32>
    %cst = arith.constant dense<0.000000e+00> : vector<8x32xf32>
    %3 = tpu.matmul %0, %2, %cst {dimension_numbers = #tpu.dot_dimension_numbers<[1], [0], [0], [1], [0, 0, 1, 1], [], []>} : vector<8x4xf32>, vector<4x32xf32>, vector<8x32xf32> -> vector<8x32xf32>
    %c0_5 = arith.constant 0 : index
    %c0_6 = arith.constant 0 : index
    %4 = vector.load %arg5[%c0_5, %c0_6] : memref<1x32xf32, #tpu.memory_space<vmem>>, vector<1x32xf32>
    %5 = vector.broadcast %4 : vector<1x32xf32> to vector<8x32xf32>
    %6 = arith.addf %3, %5 : vector<8x32xf32>
    %cst_7 = arith.constant 0.000000e+00 : f32
    %7 = vector.broadcast %cst_7 : f32 to vector<8x32xf32>
    %8 = arith.maximumf %6, %7 : vector<8x32xf32>
    %c0_8 = arith.constant 0 : index
    %c0_9 = arith.constant 0 : index
    %9 = vector.load %arg6[%c0_8, %c0_9] : memref<32x32xf32, #tpu.memory_space<vmem>>, vector<32x32xf32>
    %cst_10 = arith.constant dense<0.000000e+00> : vector<8x32xf32>
    %10 = tpu.matmul %8, %9, %cst_10 {dimension_numbers = #tpu.dot_dimension_numbers<[1], [0], [0], [1], [0, 0, 1, 1], [], []>} : vector<8x32xf32>, vector<32x32xf32>, vector<8x32xf32> -> vector<8x32xf32>
    %c0_11 = arith.constant 0 : index
    %c0_12 = arith.constant 0 : index
    %11 = vector.load %arg7[%c0_11, %c0_12] : memref<1x32xf32, #tpu.memory_space<vmem>>, vector<1x32xf32>
    %12 = vector.broadcast %11 : vector<1x32xf32> to vector<8x32xf32>
    %13 = arith.addf %10, %12 : vector<8x32xf32>
    %cst_13 = arith.constant 0.000000e+00 : f32
    %14 = vector.broadcast %cst_13 : f32 to vector<8x32xf32>
    %15 = arith.maximumf %13, %14 : vector<8x32xf32>
    %c0_14 = arith.constant 0 : index
    %c0_15 = arith.constant 0 : index
    %16 = vector.load %arg8[%c0_14, %c0_15] : memref<32x4xf32, #tpu.memory_space<vmem>>, vector<32x4xf32>
    %cst_16 = arith.constant dense<0.000000e+00> : vector<8x4xf32>
    %17 = tpu.matmul %15, %16, %cst_16 {dimension_numbers = #tpu.dot_dimension_numbers<[1], [0], [0], [1], [0, 0, 1, 1], [], []>} : vector<8x32xf32>, vector<32x4xf32>, vector<8x4xf32> -> vector<8x4xf32>
    %c0_17 = arith.constant 0 : index
    %c0_18 = arith.constant 0 : index
    %18 = vector.load %arg9[%c0_17, %c0_18] : memref<1x4xf32, #tpu.memory_space<vmem>>, vector<1x4xf32>
    %19 = vector.broadcast %18 : vector<1x4xf32> to vector<8x4xf32>
    %20 = arith.addf %17, %19 : vector<8x4xf32>
    %cst_19 = arith.constant 2.000000e+00 : f32
    %21 = vector.broadcast %cst_19 : f32 to vector<8x4xf32>
    %22 = arith.addf %20, %21 : vector<8x4xf32>
    %c0_20 = arith.constant 0 : index
    %c0_21 = arith.constant 0 : index
    %23 = vector.load %arg10[%c0_20, %c0_21] : memref<32x4xf32, #tpu.memory_space<vmem>>, vector<32x4xf32>
    %cst_22 = arith.constant dense<0.000000e+00> : vector<8x4xf32>
    %24 = tpu.matmul %15, %23, %cst_22 {dimension_numbers = #tpu.dot_dimension_numbers<[1], [0], [0], [1], [0, 0, 1, 1], [], []>} : vector<8x32xf32>, vector<32x4xf32>, vector<8x4xf32> -> vector<8x4xf32>
    %c0_23 = arith.constant 0 : index
    %c0_24 = arith.constant 0 : index
    %25 = vector.load %arg11[%c0_23, %c0_24] : memref<1x4xf32, #tpu.memory_space<vmem>>, vector<1x4xf32>
    %26 = vector.broadcast %25 : vector<1x4xf32> to vector<8x4xf32>
    %27 = arith.addf %24, %26 : vector<8x4xf32>
    %cst_25 = arith.constant 0.000000e+00 : f32
    %28 = vector.broadcast %cst_25 : f32 to vector<8x4xf32>
    %29 = arith.subf %28, %22 : vector<8x4xf32>
    %cst_26 = arith.constant 0.000000e+00 : f32
    %30 = vector.broadcast %cst_26 : f32 to vector<8x4xf32>
    %31 = arith.maximumf %29, %30 : vector<8x4xf32>
    %32 = math.absf %22 : vector<8x4xf32>
    %cst_27 = arith.constant 0.000000e+00 : f32
    %33 = vector.broadcast %cst_27 : f32 to vector<8x4xf32>
    %34 = arith.subf %33, %32 : vector<8x4xf32>
    %35 = math.exp %34 : vector<8x4xf32>
    %cst_28 = arith.constant 1.000000e+00 : f32
    %36 = vector.broadcast %cst_28 : f32 to vector<8x4xf32>
    %37 = arith.addf %36, %35 : vector<8x4xf32>
    %38 = math.log %37 : vector<8x4xf32>
    %39 = arith.addf %31, %38 : vector<8x4xf32>
    %cst_29 = arith.constant 0.000000e+00 : f32
    %40 = vector.broadcast %cst_29 : f32 to vector<8x4xf32>
    %41 = arith.subf %40, %39 : vector<8x4xf32>
    %cst_30 = arith.constant dense<0.000000e+00> : vector<8xf32>
    %42 = vector.multi_reduction <add>, %41, %cst_30 [1] : vector<8x4xf32> to vector<8xf32>
    %43 = vector.shape_cast %42 : vector<8xf32> to vector<8x1xf32>
    %44 = arith.negf %22 : vector<8x4xf32>
    %45 = math.exp %44 : vector<8x4xf32>
    %cst_31 = arith.constant 1.000000e+00 : f32
    %46 = vector.broadcast %cst_31 : f32 to vector<8x4xf32>
    %47 = arith.addf %46, %45 : vector<8x4xf32>
    %48 = arith.divf %46, %47 : vector<8x4xf32>
    %49 = arith.mulf %1, %48 : vector<8x4xf32>
    %50 = arith.addf %49, %27 : vector<8x4xf32>
    %cst_32 = arith.constant 0.000000e+00 : f32
    %51 = vector.broadcast %cst_32 : f32 to vector<8x1xf32>
    %52 = arith.subf %51, %43 : vector<8x1xf32>
    %c0_33 = arith.constant 0 : index
    %c0_34 = arith.constant 0 : index
    %53 = vector.load %arg12[%c0_33, %c0_34] : memref<8x8xf32, #tpu.memory_space<vmem>>, vector<8x4xf32>
    tpu.vector_store %arg12[%c0_33, %c0_34], %50 {strides = array<i32>} : memref<8x8xf32, #tpu.memory_space<vmem>>, vector<8x4xf32>,
    %c0_35 = arith.constant 0 : index
    %c4 = arith.constant 4 : index
    %54 = vector.load %arg12[%c0_35, %c4] : memref<8x8xf32, #tpu.memory_space<vmem>>, vector<8x4xf32>
    tpu.vector_store %arg12[%c0_35, %c4], %0 {strides = array<i32>} : memref<8x8xf32, #tpu.memory_space<vmem>>, vector<8x4xf32>,
    %c0_36 = arith.constant 0 : index
    %c0_37 = arith.constant 0 : index
    %55 = vector.load %arg3[%c0_36, %c0_37] : memref<8x1xf32, #tpu.memory_space<vmem>>, vector<8x1xf32>
    %56 = arith.addf %55, %52 : vector<8x1xf32>
    %c0_38 = arith.constant 0 : index
    %c0_39 = arith.constant 0 : index
    %57 = vector.load %arg13[%c0_38, %c0_39] : memref<8x1xf32, #tpu.memory_space<vmem>>, vector<8x1xf32>
    tpu.vector_store %arg13[%c0_38, %c0_39], %56 {strides = array<i32>} : memref<8x1xf32, #tpu.memory_space<vmem>>, vector<8x1xf32>,
    return
  }
  func.func @transform_0(%arg0: i32) -> (i32, i32) {
    %c0_i32 = arith.constant 0 : i32
    %c0_i32_0 = arith.constant 0 : i32
    return %arg0, %c0_i32 : i32, i32
  }
  func.func @transform_1(%arg0: i32) -> (i32, i32) {
    %c0_i32 = arith.constant 0 : i32
    %c0_i32_0 = arith.constant 0 : i32
    return %arg0, %c0_i32 : i32, i32
  }
  func.func @transform_2(%arg0: i32) -> (i32, i32) {
    %c0_i32 = arith.constant 0 : i32
    %c0_i32_0 = arith.constant 0 : i32
    return %arg0, %c0_i32 : i32, i32
  }
  func.func @transform_3(%arg0: i32) -> (i32, i32) {
    %c0_i32 = arith.constant 0 : i32
    %c0_i32_0 = arith.constant 0 : i32
    %c0_i32_1 = arith.constant 0 : i32
    return %c0_i32, %c0_i32_0 : i32, i32
  }
  func.func @transform_4(%arg0: i32) -> (i32, i32) {
    %c0_i32 = arith.constant 0 : i32
    %c0_i32_0 = arith.constant 0 : i32
    %c0_i32_1 = arith.constant 0 : i32
    return %c0_i32, %c0_i32_0 : i32, i32
  }
  func.func @transform_5(%arg0: i32) -> (i32, i32) {
    %c0_i32 = arith.constant 0 : i32
    %c0_i32_0 = arith.constant 0 : i32
    %c0_i32_1 = arith.constant 0 : i32
    return %c0_i32, %c0_i32_0 : i32, i32
  }
  func.func @transform_6(%arg0: i32) -> (i32, i32) {
    %c0_i32 = arith.constant 0 : i32
    %c0_i32_0 = arith.constant 0 : i32
    %c0_i32_1 = arith.constant 0 : i32
    return %c0_i32, %c0_i32_0 : i32, i32
  }
  func.func @transform_7(%arg0: i32) -> (i32, i32) {
    %c0_i32 = arith.constant 0 : i32
    %c0_i32_0 = arith.constant 0 : i32
    %c0_i32_1 = arith.constant 0 : i32
    return %c0_i32, %c0_i32_0 : i32, i32
  }
  func.func @transform_8(%arg0: i32) -> (i32, i32) {
    %c0_i32 = arith.constant 0 : i32
    %c0_i32_0 = arith.constant 0 : i32
    %c0_i32_1 = arith.constant 0 : i32
    return %c0_i32, %c0_i32_0 : i32, i32
  }
  func.func @transform_9(%arg0: i32) -> (i32, i32) {
    %c0_i32 = arith.constant 0 : i32
    %c0_i32_0 = arith.constant 0 : i32
    %c0_i32_1 = arith.constant 0 : i32
    return %c0_i32, %c0_i32_0 : i32, i32
  }
  func.func @transform_10(%arg0: i32) -> (i32, i32) {
    %c0_i32 = arith.constant 0 : i32
    %c0_i32_0 = arith.constant 0 : i32
    %c0_i32_1 = arith.constant 0 : i32
    return %c0_i32, %c0_i32_0 : i32, i32
  }
  func.func @transform_11(%arg0: i32) -> (i32, i32) {
    %c0_i32 = arith.constant 0 : i32
    %c0_i32_0 = arith.constant 0 : i32
    return %arg0, %c0_i32 : i32, i32
  }
  func.func @transform_12(%arg0: i32) -> (i32, i32) {
    %c0_i32 = arith.constant 0 : i32
    %c0_i32_0 = arith.constant 0 : i32
    return %arg0, %c0_i32 : i32, i32
  }
}

</mosaic_0001>

<llo_original>
// kernel: tpu_custom_call.1
$region0: #{tpu_custom_call.1}
  #allocation0 [shape = 'u32[]', space=smem, size = 0x4, offset = 0x4, fixed_abs, tag = 'smem constant byte address 0x4 - core index']
  #allocation1 [shape = 'u32[144,128]{1,0:T(1,128)}', space=vmem, size = 0x12000, scoped, tag = 'internal scratch']
  %s0 = inlined_call_operand.vmem [shape: f32[8,4], index: 0, kind: input, shape index: {}]
  %s1 = inlined_call_operand.vmem [shape: f32[8,4], index: 1, kind: input, shape index: {}]
  %s2 = inlined_call_operand.vmem [shape: f32[8,1], index: 2, kind: input, shape index: {}]
  %s3 = inlined_call_operand.vmem [shape: f32[4,32], index: 3, kind: input, shape index: {}]
  %s4 = inlined_call_operand.vmem [shape: f32[1,32], index: 4, kind: input, shape index: {}]
  %s5 = inlined_call_operand.vmem [shape: f32[32,32], index: 5, kind: input, shape index: {}]
  %s6 = inlined_call_operand.vmem [shape: f32[1,32], index: 6, kind: input, shape index: {}]
  %s7 = inlined_call_operand.vmem [shape: f32[32,4], index: 7, kind: input, shape index: {}]
  %s8 = inlined_call_operand.vmem [shape: f32[1,4], index: 8, kind: input, shape index: {}]
  %s9 = inlined_call_operand.vmem [shape: f32[32,4], index: 9, kind: input, shape index: {}]
  %s10 = inlined_call_operand.vmem [shape: f32[1,4], index: 10, kind: input, shape index: {}]
  %s11 = inlined_call_operand.hbm [shape: f32[8,8], index: 11, kind: output, shape index: {0}]
  %s12 = inlined_call_operand.vmem [shape: f32[8,1], index: 12, kind: output, shape index: {1}]
  %13 = xla_tuple %s11, %s12
  %s14 = sld [smem:[#allocation0]]
  $region62: #{tpu_custom_call.1} parent=0
    _
  %s16 = ssub.s32 1, %s14
  %s17 = scalar_select 0, %s16, %s14
  $region1: #{tpu_custom_call.1} parent=0
    #allocation2 [shape = 'u8[4096]{0}', space=vmem, size = 0x1000, scoped, tag = 'output window, operand 0, single buffered']
    #allocation3 [shape = 's32[1]{0}', space=sflag, size = 0x4, scoped, tag = 'scoped memory for tpu_custom_call.1']
    %18 = vsyncpa [#allocation3], 0
    // Predicated region
    $region2: #{tpu_custom_call.1} parent=1 // pred_check
      _
    $region3: #{tpu_custom_call.1} parent=1 // pred_check_branch
      %20 = sbr.rel (0) target = $region5
    $region4: #{tpu_custom_call.1} parent=1 // pred_region
      _
    $region5: #{tpu_custom_call.1} parent=1 // pred_fallthru
      _
    // Predicated region
    $region6: #{tpu_custom_call.1} parent=1 // pred_check
      _
    $region7: #{tpu_custom_call.1} parent=1 // pred_check_branch
      %22 = sbr.rel (0) target = $region9
    $region8: #{tpu_custom_call.1} parent=1 // pred_region
      _
    $region9: #{tpu_custom_call.1} parent=1 // pred_fallthru
      _
    // Predicated region
    $region10: #{tpu_custom_call.1} parent=1 // pred_check
      _
    $region11: #{tpu_custom_call.1} parent=1 // pred_check_branch
      %24 = sbr.rel (0) target = $region13
    $region12: #{tpu_custom_call.1} parent=1 // pred_region
      _
    $region13: #{tpu_custom_call.1} parent=1 // pred_fallthru
      _
    // Predicated region
    $region14: #{tpu_custom_call.1} parent=1 // pred_check
      _
    $region15: #{tpu_custom_call.1} parent=1 // pred_check_branch
      %26 = sbr.rel (0) target = $region17
    $region16: #{tpu_custom_call.1} parent=1 // pred_region
      _
    $region17: #{tpu_custom_call.1} parent=1 // pred_fallthru
      _
    // Predicated region
    $region18: #{tpu_custom_call.1} parent=1 // pred_check
      _
    $region19: #{tpu_custom_call.1} parent=1 // pred_check_branch
      %28 = sbr.rel (0) target = $region21
    $region20: #{tpu_custom_call.1} parent=1 // pred_region
      _
    $region21: #{tpu_custom_call.1} parent=1 // pred_fallthru
      _
    // Predicated region
    $region22: #{tpu_custom_call.1} parent=1 // pred_check
      _
    $region23: #{tpu_custom_call.1} parent=1 // pred_check_branch
      %30 = sbr.rel (0) target = $region25
    $region24: #{tpu_custom_call.1} parent=1 // pred_region
      _
    $region25: #{tpu_custom_call.1} parent=1 // pred_fallthru
      _
    // Predicated region
    $region26: #{tpu_custom_call.1} parent=1 // pred_check
      _
    $region27: #{tpu_custom_call.1} parent=1 // pred_check_branch
      %32 = sbr.rel (0) target = $region29
    $region28: #{tpu_custom_call.1} parent=1 // pred_region
      _
    $region29: #{tpu_custom_call.1} parent=1 // pred_fallthru
      _
    // Predicated region
    $region30: #{tpu_custom_call.1} parent=1 // pred_check
      _
    $region31: #{tpu_custom_call.1} parent=1 // pred_check_branch
      %34 = sbr.rel (0) target = $region33
    $region32: #{tpu_custom_call.1} parent=1 // pred_region
      _
    $region33: #{tpu_custom_call.1} parent=1 // pred_fallthru
      _
    // Predicated region
    $region34: #{tpu_custom_call.1} parent=1 // pred_check
      _
    $region35: #{tpu_custom_call.1} parent=1 // pred_check_branch
      %36 = sbr.rel (0) target = $region37
    $region36: #{tpu_custom_call.1} parent=1 // pred_region
      _
    $region37: #{tpu_custom_call.1} parent=1 // pred_fallthru
      _
    // Predicated region
    $region38: #{tpu_custom_call.1} parent=1 // pred_check
      _
    $region39: #{tpu_custom_call.1} parent=1 // pred_check_branch
      %38 = sbr.rel (0) target = $region41
    $region40: #{tpu_custom_call.1} parent=1 // pred_region
      _
    $region41: #{tpu_custom_call.1} parent=1 // pred_fallthru
      _
    // Predicated region
    $region42: #{tpu_custom_call.1} parent=1 // pred_check
      _
    $region43: #{tpu_custom_call.1} parent=1 // pred_check_branch
      %40 = sbr.rel (0) target = $region45
    $region44: #{tpu_custom_call.1} parent=1 // pred_region
      _
    $region45: #{tpu_custom_call.1} parent=1 // pred_fallthru
      _
    %v41 = vld [vmem:[%s0] sm:$0xff]
    %v42 = vld [vmem:[%s1] sm:$0xff]
    %v43 = vld [vmem:[%s3] sm:$0xf]
    %v44 = vld [vmem:[%s4] sm:$0x1]
    %v46 = vlaneseq
    %v47 = vshrl.u32 %v46, 7
    %v48 = vsub.s32 0, %v47
    %v49 = vrot.slane %v44, %v48
    %vm51 = vcmask 31744
    %v53 = vsel %vm51, %v41, 0
    %vm55 = vcmask 1043456
    %v57 = vsel %vm55, %v43, 0
    %59 = vmatprep.subr.mxu0 0.0
    %60 = vmatpush1.msra.mxu0 %v57
    %61 = vmatprep.subr.mxu0 0.0
    %62 = vmatpush1.msra.mxu0 0.0
    %63 = vmatprep.subr.mxu0 0.0
    %64 = vmatpush1.msra.mxu0 0.0
    %65 = vmatprep.subr.mxu0 0.0
    %66 = vmatpush1.msra.mxu0 0.0
    %67 = vmatprep.subr.mxu0 0.0
    %68 = vmatpush1.msra.mxu0 0.0
    %69 = vmatprep.subr.mxu0 0.0
    %70 = vmatpush1.msra.mxu0 0.0
    %71 = vmatprep.subr.mxu0 0.0
    %72 = vmatpush1.msra.mxu0 0.0
    %73 = vmatprep.subr.mxu0 0.0
    %74 = vmatpush1.msra.mxu0 0.0
    %75 = vmatprep.subr.mxu0 0.0
    %76 = vmatpush1.msra.mxu0 0.0
    %77 = vmatprep.subr.mxu0 0.0
    %78 = vmatpush1.msra.mxu0 0.0
    %79 = vmatprep.subr.mxu0 0.0
    %80 = vmatpush1.msra.mxu0 0.0
    %81 = vmatprep.subr.mxu0 0.0
    %82 = vmatpush1.msra.mxu0 0.0
    %83 = vmatprep.subr.mxu0 0.0
    %84 = vmatpush1.msra.mxu0 0.0
    %85 = vmatprep.subr.mxu0 0.0
    %86 = vmatpush1.msra.mxu0 0.0
    %87 = vmatprep.subr.mxu0 0.0
    %88 = vmatpush1.msra.mxu0 0.0
    %89 = vmatprep.subr.mxu0 0.0
    %90 = vmatpush1.msra.mxu0 0.0
    %91 = vmatprep.subr.mxu0 0.0
    %92 = vmatpush1.msra.mxu0 0.0
    %93 = vmatprep.subr.mxu0 0.0
    %94 = vmatpush1.msra.mxu0 0.0
    %95 = vmatprep.subr.mxu0 0.0
    %96 = vmatpush1.msra.mxu0 0.0
    %97 = vmatprep.subr.mxu0 0.0
    %98 = vmatpush1.msra.mxu0 0.0
    %99 = vmatprep.subr.mxu0 0.0
    %100 = vmatpush1.msra.mxu0 0.0
    %101 = vmatprep.subr.mxu0 0.0
    %102 = vmatpush1.msra.mxu0 0.0
    %103 = vmatprep.subr.mxu0 0.0
    %104 = vmatpush1.msra.mxu0 0.0
    %105 = vmatprep.subr.mxu0 0.0
    %106 = vmatpush1.msra.mxu0 0.0
    %107 = vmatprep.subr.mxu0 0.0
    %108 = vmatpush1.msra.mxu0 0.0
    %109 = vmatprep.subr.mxu0 0.0
    %110 = vmatpush1.msra.mxu0 0.0
    %111 = vmatprep.subr.mxu0 0.0
    %112 = vmatpush1.msra.mxu0 0.0
    %113 = vmatprep.subr.mxu0 0.0
    %114 = vmatpush1.msra.mxu0 0.0
    %115 = vmatprep.subr.mxu0 0.0
    %116 = vmatpush1.msra.mxu0 0.0
    %117 = vmatprep.subr.mxu0 0.0
    %118 = vmatpush1.msra.mxu0 0.0
    %119 = vmatprep.subr.mxu0 0.0
    %120 = vmatpush1.msra.mxu0 0.0
    %121 = vmatprep.subr.mxu0 0.0
    %122 = vmatpush1.msra.mxu0 0.0
    %123 = vmatprep.mubr.f32.mxu0 0.0
    %124 = vmatmul.mubr.f32.gmra.mrb[0].mxu0 %v53
    %v125 = vpop.f32.mrb[0].mxu0
    %v126 = vadd.f32 %v49, %v125
    %v127 = vpop.f32.mrb[0].mxu0
    %128 = vdwg.mxu0
    %v129 = vmax.f32 %v126, 0.0
    %v130 = vld [vmem:[%s5] sm:$0xff]
    %v131 = vld [vmem:[%s5 + $0x8] sm:$0xff]
    %v132 = vld [vmem:[%s5 + $0x10] sm:$0xff]
    %v133 = vld [vmem:[%s5 + $0x18] sm:$0xff]
    %v134 = vld [vmem:[%s6] sm:$0x1]
    %v136 = vlaneseq
    %v137 = vshrl.u32 %v136, 7
    %v138 = vsub.s32 0, %v137
    %v139 = vrot.slane %v134, %v138
    %vm141 = vcmask 261120
    %v143 = vsel %vm141, %v129, 0
    %145 = vmatprep.subr.mxu0 0.0
    %146 = vmatpush1.msra.mxu0 %v130
    %147 = vmatprep.subr.mxu0 0.0
    %148 = vmatpush1.msra.mxu0 %v131
    %149 = vmatprep.subr.mxu0 0.0
    %150 = vmatpush1.msra.mxu0 %v132
    %151 = vmatprep.subr.mxu0 0.0
    %152 = vmatpush1.msra.mxu0 %v133
    %153 = vmatprep.subr.mxu0 0.0
    %154 = vmatpush1.msra.mxu0 0.0
    %155 = vmatprep.subr.mxu0 0.0
    %156 = vmatpush1.msra.mxu0 0.0
    %157 = vmatprep.subr.mxu0 0.0
    %158 = vmatpush1.msra.mxu0 0.0
    %159 = vmatprep.subr.mxu0 0.0
    %160 = vmatpush1.msra.mxu0 0.0
    %161 = vmatprep.subr.mxu0 0.0
    %162 = vmatpush1.msra.mxu0 0.0
    %163 = vmatprep.subr.mxu0 0.0
    %164 = vmatpush1.msra.mxu0 0.0
    %165 = vmatprep.subr.mxu0 0.0
    %166 = vmatpush1.msra.mxu0 0.0
    %167 = vmatprep.subr.mxu0 0.0
    %168 = vmatpush1.msra.mxu0 0.0
    %169 = vmatprep.subr.mxu0 0.0
    %170 = vmatpush1.msra.mxu0 0.0
    %171 = vmatprep.subr.mxu0 0.0
    %172 = vmatpush1.msra.mxu0 0.0
    %173 = vmatprep.subr.mxu0 0.0
    %174 = vmatpush1.msra.mxu0 0.0
    %175 = vmatprep.subr.mxu0 0.0
    %176 = vmatpush1.msra.mxu0 0.0
    %177 = vmatprep.subr.mxu0 0.0
    %178 = vmatpush1.msra.mxu0 0.0
    %179 = vmatprep.subr.mxu0 0.0
    %180 = vmatpush1.msra.mxu0 0.0
    %181 = vmatprep.subr.mxu0 0.0
    %182 = vmatpush1.msra.mxu0 0.0
    %183 = vmatprep.subr.mxu0 0.0
    %184 = vmatpush1.msra.mxu0 0.0
    %185 = vmatprep.subr.mxu0 0.0
    %186 = vmatpush1.msra.mxu0 0.0
    %187 = vmatprep.subr.mxu0 0.0
    %188 = vmatpush1.msra.mxu0 0.0
    %189 = vmatprep.subr.mxu0 0.0
    %190 = vmatpush1.msra.mxu0 0.0
    %191 = vmatprep.subr.mxu0 0.0
    %192 = vmatpush1.msra.mxu0 0.0
    %193 = vmatprep.subr.mxu0 0.0
    %194 = vmatpush1.msra.mxu0 0.0
    %195 = vmatprep.subr.mxu0 0.0
    %196 = vmatpush1.msra.mxu0 0.0
    %197 = vmatprep.subr.mxu0 0.0
    %198 = vmatpush1.msra.mxu0 0.0
    %199 = vmatprep.subr.mxu0 0.0
    %200 = vmatpush1.msra.mxu0 0.0
    %201 = vmatprep.subr.mxu0 0.0
    %202 = vmatpush1.msra.mxu0 0.0
    %203 = vmatprep.subr.mxu0 0.0
    %204 = vmatpush1.msra.mxu0 0.0
    %205 = vmatprep.subr.mxu0 0.0
    %206 = vmatpush1.msra.mxu0 0.0
    %207 = vmatprep.subr.mxu0 0.0
    %208 = vmatpush1.msra.mxu0 0.0
    %209 = vmatprep.mubr.f32.mxu0 0.0
    %210 = vmatmul.mubr.f32.gmra.mrb[0].mxu0 %v143
    %v211 = vpop.f32.mrb[0].mxu0
    %v212 = vadd.f32 %v139, %v211
    %v213 = vpop.f32.mrb[0].mxu0
    %214 = vdwg.mxu0
    %v215 = vmax.f32 %v212, 0.0
    %v216 = vld [vmem:[%s7] sm:$0xff]
    %v217 = vld [vmem:[%s7 + $0x8] sm:$0xff]
    %v218 = vld [vmem:[%s7 + $0x10] sm:$0xff]
    %v219 = vld [vmem:[%s7 + $0x18] sm:$0xff]
    %v220 = vld [vmem:[%s8] sm:$0x1]
    %v222 = vlaneseq
    %v223 = vshrl.u32 %v222, 7
    %v224 = vsub.s32 0, %v223
    %v225 = vrot.slane %v220, %v224
    %v228 = vsel %vm141, %v215, 0
    %230 = vmatprep.subr.mxu0 0.0
    %231 = vmatpush1.msra.mxu0 %v216
    %232 = vmatprep.subr.mxu0 0.0
    %233 = vmatpush1.msra.mxu0 %v217
    %234 = vmatprep.subr.mxu0 0.0
    %235 = vmatpush1.msra.mxu0 %v218
    %236 = vmatprep.subr.mxu0 0.0
    %237 = vmatpush1.msra.mxu0 %v219
    %238 = vmatprep.subr.mxu0 0.0
    %239 = vmatpush1.msra.mxu0 0.0
    %240 = vmatprep.subr.mxu0 0.0
    %241 = vmatpush1.msra.mxu0 0.0
    %242 = vmatprep.subr.mxu0 0.0
    %243 = vmatpush1.msra.mxu0 0.0
    %244 = vmatprep.subr.mxu0 0.0
    %245 = vmatpush1.msra.mxu0 0.0
    %246 = vmatprep.subr.mxu0 0.0
    %247 = vmatpush1.msra.mxu0 0.0
    %248 = vmatprep.subr.mxu0 0.0
    %249 = vmatpush1.msra.mxu0 0.0
    %250 = vmatprep.subr.mxu0 0.0
    %251 = vmatpush1.msra.mxu0 0.0
    %252 = vmatprep.subr.mxu0 0.0
    %253 = vmatpush1.msra.mxu0 0.0
    %254 = vmatprep.subr.mxu0 0.0
    %255 = vmatpush1.msra.mxu0 0.0
    %256 = vmatprep.subr.mxu0 0.0
    %257 = vmatpush1.msra.mxu0 0.0
    %258 = vmatprep.subr.mxu0 0.0
    %259 = vmatpush1.msra.mxu0 0.0
    %260 = vmatprep.subr.mxu0 0.0
    %261 = vmatpush1.msra.mxu0 0.0
    %262 = vmatprep.subr.mxu0 0.0
    %263 = vmatpush1.msra.mxu0 0.0
    %264 = vmatprep.subr.mxu0 0.0
    %265 = vmatpush1.msra.mxu0 0.0
    %266 = vmatprep.subr.mxu0 0.0
    %267 = vmatpush1.msra.mxu0 0.0
    %268 = vmatprep.subr.mxu0 0.0
    %269 = vmatpush1.msra.mxu0 0.0
    %270 = vmatprep.subr.mxu0 0.0
    %271 = vmatpush1.msra.mxu0 0.0
    %272 = vmatprep.subr.mxu0 0.0
    %273 = vmatpush1.msra.mxu0 0.0
    %274 = vmatprep.subr.mxu0 0.0
    %275 = vmatpush1.msra.mxu0 0.0
    %276 = vmatprep.subr.mxu0 0.0
    %277 = vmatpush1.msra.mxu0 0.0
    %278 = vmatprep.subr.mxu0 0.0
    %279 = vmatpush1.msra.mxu0 0.0
    %280 = vmatprep.subr.mxu0 0.0
    %281 = vmatpush1.msra.mxu0 0.0
    %282 = vmatprep.subr.mxu0 0.0
    %283 = vmatpush1.msra.mxu0 0.0
    %284 = vmatprep.subr.mxu0 0.0
    %285 = vmatpush1.msra.mxu0 0.0
    %286 = vmatprep.subr.mxu0 0.0
    %287 = vmatpush1.msra.mxu0 0.0
    %288 = vmatprep.subr.mxu0 0.0
    %289 = vmatpush1.msra.mxu0 0.0
    %290 = vmatprep.subr.mxu0 0.0
    %291 = vmatpush1.msra.mxu0 0.0
    %292 = vmatprep.subr.mxu0 0.0
    %293 = vmatpush1.msra.mxu0 0.0
    %294 = vmatprep.mubr.f32.mxu0 0.0
    %295 = vmatmul.mubr.f32.gmra.mrb[0].mxu0 %v228
    %v296 = vpop.f32.mrb[0].mxu0
    %v297 = vadd.f32 %v225, %v296
    %v298 = vpop.f32.mrb[0].mxu0
    %299 = vdwg.mxu0
    %v300 = vadd.f32 %v297, 2.0
    %v301 = vld [vmem:[%s9] sm:$0xff]
    %v302 = vld [vmem:[%s9 + $0x8] sm:$0xff]
    %v303 = vld [vmem:[%s9 + $0x10] sm:$0xff]
    %v304 = vld [vmem:[%s9 + $0x18] sm:$0xff]
    %v305 = vld [vmem:[%s10] sm:$0x1]
    %v307 = vlaneseq
    %v308 = vshrl.u32 %v307, 7
    %v309 = vsub.s32 0, %v308
    %v310 = vrot.slane %v305, %v309
    %312 = vmatprep.subr.mxu0 0.0
    %313 = vmatpush1.msra.mxu0 %v301
    %314 = vmatprep.subr.mxu0 0.0
    %315 = vmatpush1.msra.mxu0 %v302
    %316 = vmatprep.subr.mxu0 0.0
    %317 = vmatpush1.msra.mxu0 %v303
    %318 = vmatprep.subr.mxu0 0.0
    %319 = vmatpush1.msra.mxu0 %v304
    %320 = vmatprep.subr.mxu0 0.0
    %321 = vmatpush1.msra.mxu0 0.0
    %322 = vmatprep.subr.mxu0 0.0
    %323 = vmatpush1.msra.mxu0 0.0
    %324 = vmatprep.subr.mxu0 0.0
    %325 = vmatpush1.msra.mxu0 0.0
    %326 = vmatprep.subr.mxu0 0.0
    %327 = vmatpush1.msra.mxu0 0.0
    %328 = vmatprep.subr.mxu0 0.0
    %329 = vmatpush1.msra.mxu0 0.0
    %330 = vmatprep.subr.mxu0 0.0
    %331 = vmatpush1.msra.mxu0 0.0
    %332 = vmatprep.subr.mxu0 0.0
    %333 = vmatpush1.msra.mxu0 0.0
    %334 = vmatprep.subr.mxu0 0.0
    %335 = vmatpush1.msra.mxu0 0.0
    %336 = vmatprep.subr.mxu0 0.0
    %337 = vmatpush1.msra.mxu0 0.0
    %338 = vmatprep.subr.mxu0 0.0
    %339 = vmatpush1.msra.mxu0 0.0
    %340 = vmatprep.subr.mxu0 0.0
    %341 = vmatpush1.msra.mxu0 0.0
    %342 = vmatprep.subr.mxu0 0.0
    %343 = vmatpush1.msra.mxu0 0.0
    %344 = vmatprep.subr.mxu0 0.0
    %345 = vmatpush1.msra.mxu0 0.0
    %346 = vmatprep.subr.mxu0 0.0
    %347 = vmatpush1.msra.mxu0 0.0
    %348 = vmatprep.subr.mxu0 0.0
    %349 = vmatpush1.msra.mxu0 0.0
    %350 = vmatprep.subr.mxu0 0.0
    %351 = vmatpush1.msra.mxu0 0.0
    %352 = vmatprep.subr.mxu0 0.0
    %353 = vmatpush1.msra.mxu0 0.0
    %354 = vmatprep.subr.mxu0 0.0
    %355 = vmatpush1.msra.mxu0 0.0
    %356 = vmatprep.subr.mxu0 0.0
    %357 = vmatpush1.msra.mxu0 0.0
    %358 = vmatprep.subr.mxu0 0.0
    %359 = vmatpush1.msra.mxu0 0.0
    %360 = vmatprep.subr.mxu0 0.0
    %361 = vmatpush1.msra.mxu0 0.0
    %362 = vmatprep.subr.mxu0 0.0
    %363 = vmatpush1.msra.mxu0 0.0
    %364 = vmatprep.subr.mxu0 0.0
    %365 = vmatpush1.msra.mxu0 0.0
    %366 = vmatprep.subr.mxu0 0.0
    %367 = vmatpush1.msra.mxu0 0.0
    %368 = vmatprep.subr.mxu0 0.0
    %369 = vmatpush1.msra.mxu0 0.0
    %370 = vmatprep.subr.mxu0 0.0
    %371 = vmatpush1.msra.mxu0 0.0
    %372 = vmatprep.subr.mxu0 0.0
    %373 = vmatpush1.msra.mxu0 0.0
    %374 = vmatprep.subr.mxu0 0.0
    %375 = vmatpush1.msra.mxu0 0.0
    %376 = vmatprep.mubr.f32.mxu0 0.0
    %377 = vmatmul.mubr.f32.gmra.mrb[0].mxu0 %v228
    %v378 = vpop.f32.mrb[0].mxu0
    %v379 = vadd.f32 %v310, %v378
    %v380 = vpop.f32.mrb[0].mxu0
    %381 = vdwg.mxu0
    %v382 = vsub.f32 0.0, %v300
    %v383 = vmax.f32 %v382, 0.0
    %v384 = vand.u32 2147483647, %v300
    %v385 = vsub.f32 0.0, %v384
    %v386 = vmul.f32 %v385, 1.442695
    %v387 = vpow.pop %v386
    %v388 = vadd.f32 %v387, 1.0
    %v389 = vlog2.pop %v388
    %v390 = vmul.f32 %v389, 0.6931472
    %v391 = vadd.f32 %v383, %v390
    %v392 = vsub.f32 0.0, %v391
    %v393 = vsel %vm51, %v392, 0.0
    %394 = vadd.xlane.f32.xlu0 %v393
    %v395 = vpop.xlane.xlu0 %394
    %v396 = vxor.u32 %v300, 2147483648
    %v397 = vmul.f32 %v396, 1.442695
    %v398 = vpow.pop %v397
    %v399 = vadd.f32 %v398, 1.0
    %v400 = vrcp.pop %v399
    %v401 = vmul.f32 1.0, %v400
    %v402 = vmul.f32 %v42, %v401
    %v403 = vadd.f32 %v402, %v379
    %v404 = vsub.f32 0.0, %v395
    %405 = vst.msk [vmem:[#allocation2] sm:$0xff] %vm51, %v403
    %406 = vrot.lane.b32.xlu0 %v41, 4
    %v407 = vpop.permute.xlu0 %406
    %vm409 = vcmask 64544
    %410 = vst.msk [vmem:[#allocation2] sm:$0xff] %vm409, %v407
    %v411 = vld [vmem:[%s2] sm:$0xff]
    %v412 = vadd.f32 %v411, %v404
    %vm413 = vcmask 7168
    %414 = vst.msk [vmem:[%s12] sm:$0xff] %vm413, %v412
    // Predicated region
    $region46: #{tpu_custom_call.1} parent=1 // pred_check
      _
    $region47: #{tpu_custom_call.1} parent=1 // pred_check_branch
      %416 = sbr.rel (0) target = $region49
    $region48: #{tpu_custom_call.1} parent=1 // pred_region
      %s418 = ssub.s32 128, 128
      %419 = vsyncadd [#allocation3], %s418
      %s421 = sshll.u32 [#allocation2], 4
      %s422 = int_to_ptr.vmem [resolvable:$true] %s421
      %424 = dma.vmem_to_hbm [thread:$0]  %s422, 128, %s11, [#allocation3]
    $region49: #{tpu_custom_call.1} parent=1 // pred_fallthru
      _
    // Predicated region
    $region50: #{tpu_custom_call.1} parent=1 // pred_check
      _
    $region51: #{tpu_custom_call.1} parent=1 // pred_check_branch
      %426 = sbr.rel (0) target = $region53
    $region52: #{tpu_custom_call.1} parent=1 // pred_region
      _
    $region53: #{tpu_custom_call.1} parent=1 // pred_fallthru
      _
    // Predicated region
    $region54: #{tpu_custom_call.1} parent=1 // pred_check
      _
    $region55: #{tpu_custom_call.1} parent=1 // pred_check_branch
      %428 = sbr.rel (0) target = $region57
    $region56: #{tpu_custom_call.1} parent=1 // pred_region
      %429 = dma.done [#allocation3], 128
    $region57: #{tpu_custom_call.1} parent=1 // pred_fallthru
      _
    // Predicated region
    $region58: #{tpu_custom_call.1} parent=1 // pred_check
      _
    $region59: #{tpu_custom_call.1} parent=1 // pred_check_branch
      %431 = sbr.rel (0) target = $region61
    $region60: #{tpu_custom_call.1} parent=1 // pred_region
      _
    $region61: #{tpu_custom_call.1} parent=1 // pred_fallthru
      _
    %432 = vsyncpa [#allocation3], 1

</llo_original>
